<compile_context>
chip_gen: v6e
topology: v6e:2x2x1
jax: 0.10.0
libtpu: 0.0.40
codegen_flags: <defaults>
</compile_context>

<pallas_src>
import functools

import jax
import jax.numpy as jnp
from jax import lax
from jax.experimental import pallas as pl
from jax.experimental.pallas import tpu as pltpu


def _linear_attention_kernel(x_ref, wq_ref, wk_ref, wv_ref, wo_ref, b_ref,
                             hmask_ref, cmask_ref, o_ref,
                             m_sc, l_sc, ctx_sc, g_sc, *, has_pad):
    """Grid = (B, 2, NT).  axis 1: pass 0 = accumulate, pass 1 = emit."""
    p = pl.program_id(1)
    t = pl.program_id(2)
    cdt = x_ref.dtype                       # native MXU operand dtype

    # ---------- pass 0: online softmax(k) + packed-head context ------------
    @pl.when(p == 0)
    def _pass0():
        @pl.when(t == 0)
        def _init():
            m_sc[...] = jnp.full_like(m_sc, -jnp.inf)
            l_sc[...] = jnp.zeros_like(l_sc)
            ctx_sc[...] = jnp.zeros_like(ctx_sc)

        x = x_ref[...]                                             # (dim, Tn)
        # k needs f32 for the softmax; v stays in the native dtype (no cast).
        k = jnp.dot(wk_ref[...], x, preferred_element_type=jnp.float32)
        v = jnp.dot(wv_ref[...], x, preferred_element_type=cdt)

        m_prev = m_sc[...]                                         # (h, 1)
        m_new = jnp.maximum(m_prev, jnp.max(k, axis=-1, keepdims=True))
        pexp = jnp.exp(k - m_new)                                  # (h, Tn) f32
        if has_pad:
            # resident 0/1 column mask: padded columns contribute exactly 0.
            pexp = pexp * cmask_ref[...]
        alpha = jnp.exp(m_prev - m_new)                            # (h, 1)
        l_sc[...] = alpha * l_sc[...] + jnp.sum(pexp, axis=-1, keepdims=True)
        # ctx[d, e] += sum_n pexp[d, n] * v[e, n]  (packed heads; same
        # last-dim contraction pattern Mosaic handles for flash q @ k^T).
        pv = lax.dot_general(pexp.astype(cdt), v, (((1,), (1,)), ((), ())),
                             preferred_element_type=jnp.float32)   # (h, h)
        ctx_sc[...] = alpha * ctx_sc[...] + pv
        m_sc[...] = m_new

    # ---------- pass 1: fold everything into one (dim, dim) matmul ---------
    @pl.when(p == 1)
    def _pass1():
        @pl.when(t == 0)
        def _fold():
            # normalized, per-head block-diagonal context (exact divide; the
            # (h, h) tensor is tiny so no approx reciprocal is needed).
            ctx = ctx_sc[...] * (1.0 / l_sc[...]) * hmask_ref[...]
            # M[o, d] = sum_e w_out[o, e] * ctx[d, e]
            m_mat = lax.dot_general(wo_ref[...].astype(jnp.float32), ctx,
                                    (((1,), (1,)), ((), ())),
                                    preferred_element_type=jnp.float32)
            # y = w_out @ (ctx^T q) + b  with  q = Wq_s @ x  collapses to
            # y = (M @ Wq_s) @ x + b = G @ x + b.
            g = jnp.dot(m_mat, wq_ref[...].astype(jnp.float32),
                        preferred_element_type=jnp.float32)        # (dim, dim)
            g_sc[...] = g.astype(g_sc.dtype)

        y = jnp.dot(g_sc[...], x_ref[...], preferred_element_type=jnp.float32)
        o_ref[...] = (y + b_ref[...]).astype(o_ref.dtype)


def _vmem_capacity_bytes():
    try:
        cap = int(getattr(pltpu.get_tpu_info(), "vmem_capacity_bytes", 0))
        if cap > 0:
            return cap
    except Exception:
        pass
    return 64 * 1024 * 1024          # v7x (smallest) as a safe fallback


def linear_attention(x, w_qkv, w_out, b_out, *, heads, dim_head,
                     tile_n=1024, compute_dtype=None):
    """x: (B, dim, N); w_qkv: (3*hidden, dim); w_out: (dim, hidden); b_out: (dim,)."""
    B, dim, N = x.shape
    hidden = heads * dim_head
    out_dtype = x.dtype
    scale = dim_head ** (-0.5)

    # Optional bf16 operand cast (full-rate MXU on v6e/v7x); accumulation
    # stays f32 inside the kernel either way.
    cdt = jnp.dtype(compute_dtype) if compute_dtype is not None else x.dtype
    x = x.astype(cdt)
    w_qkv = w_qkv.astype(cdt)
    w_out = w_out.astype(cdt)

    # Fold the q scale into the q rows of the qkv weight at trace time.
    w_q = w_qkv[:hidden] * jnp.asarray(scale, cdt)          # (h, dim)
    w_k = w_qkv[hidden:2 * hidden]                          # (h, dim)
    w_v = w_qkv[2 * hidden:]                                # (h, dim)
    bias = b_out.reshape(dim, 1).astype(jnp.float32)

    # Sequence tiling: lane-dense tiles, 128-aligned, bounded by ~tile_n.
    tile_n = max(128, (int(tile_n) // 128) * 128)
    tile_n = min(tile_n, pl.cdiv(N, 128) * 128)
    nt = pl.cdiv(N, tile_n)
    n_pad = nt * tile_n
    has_pad = n_pad != N
    if has_pad:
        # TODO(synk): handle the ragged last input tile with a masked partial
        # block instead of a wrapper-side pad (saves one HBM round trip on x).
        x = jnp.pad(x, ((0, 0), (0, 0), (0, n_pad - N)))

    # Resident masks, computed once at trace time (tiny).
    col_mask = (jnp.arange(n_pad) < N).astype(jnp.float32).reshape(1, n_pad)
    head_id = jnp.arange(hidden) // dim_head
    head_mask = (head_id[:, None] == head_id[None, :]).astype(jnp.float32)

    # Generation-aware scoped-VMEM limit; per-step footprint is tile-bounded.
    isz = jnp.dtype(cdt).itemsize
    need = (2 * 2 * dim * tile_n * max(isz, jnp.dtype(out_dtype).itemsize)
            + 6 * hidden * tile_n * 4
            + 4 * hidden * hidden * 4
            + 4 * hidden * dim * isz)
    vmem_limit = int(min(int(_vmem_capacity_bytes() * 0.85),
                         max(32 * 1024 * 1024, 2 * need)))

    kernel = functools.partial(_linear_attention_kernel, has_pad=has_pad)

    # Note: dim / hidden that are multiples of 8 avoid sublane-layout copies.
    out = pl.pallas_call(
        kernel,
        out_shape=jax.ShapeDtypeStruct((B, dim, N), out_dtype),
        grid=(B, 2, nt),
        in_specs=[
            pl.BlockSpec((None, dim, tile_n), lambda b_, p_, t_: (b_, 0, t_)),
            pl.BlockSpec((hidden, dim), lambda b_, p_, t_: (0, 0)),
            pl.BlockSpec((hidden, dim), lambda b_, p_, t_: (0, 0)),
            pl.BlockSpec((hidden, dim), lambda b_, p_, t_: (0, 0)),
            pl.BlockSpec((dim, hidden), lambda b_, p_, t_: (0, 0)),
            pl.BlockSpec((dim, 1), lambda b_, p_, t_: (0, 0)),
            pl.BlockSpec((hidden, hidden), lambda b_, p_, t_: (0, 0)),
            pl.BlockSpec((1, tile_n), lambda b_, p_, t_: (0, t_)),
        ],
        # During pass 0 the output block stays parked at tile 0 (never written
        # back until pass 1 overwrites it); pass 1 streams lane-dense tiles.
        out_specs=pl.BlockSpec((None, dim, tile_n),
                               lambda b_, p_, t_: (b_, 0, t_ * p_)),
        scratch_shapes=[
            pltpu.VMEM((hidden, 1), jnp.float32),       # running max
            pltpu.VMEM((hidden, 1), jnp.float32),       # running denominator
            pltpu.VMEM((hidden, hidden), jnp.float32),  # packed context acc
            pltpu.VMEM((dim, dim), cdt),                # fused G matrix
        ],
        compiler_params=pltpu.CompilerParams(
            dimension_semantics=("parallel", "arbitrary", "arbitrary"),
            vmem_limit_bytes=vmem_limit),
    )(x, w_q, w_k, w_v, w_out, bias, head_mask, col_mask)
    return out


def linear_attention_ref(x, w_qkv, w_out, b_out, *, heads, dim_head):
    """Pure-JAX reference mirroring the PyTorch forward."""
    B, dim, N = x.shape
    hidden = heads * dim_head
    scale = dim_head ** (-0.5)

    qkv = jnp.einsum('oc,bcn->bon', w_qkv, x)
    q, k, v = jnp.split(qkv, 3, axis=1)
    rearr = lambda t: t.reshape(B, heads, dim_head, N)
    q = rearr(q) * scale
    k = jax.nn.softmax(rearr(k), axis=-1)
    v = rearr(v)
    context = jnp.einsum('bhdn,bhen->bhde', k, v)
    out = jnp.einsum('bhde,bhdn->bhen', context, q)
    out = out.reshape(B, hidden, N)
    return jnp.einsum('oc,bcn->bon', w_out, out) + b_out.reshape(1, dim, 1)


if __name__ == "__main__":
    # Small shapes consistent with the module; N=200 with tile_n=128 exercises
    # multi-tile online-softmax accumulation, the padded-column mask and the
    # ragged (masked) last output block.
    B, dim, N = 2, 8, 200
    heads, dim_head = 4, 8
    hidden = heads * dim_head

    key = jax.random.PRNGKey(0)
    kx, kq, ko, kb = jax.random.split(key, 4)

    x = jax.random.normal(kx, (B, dim, N), dtype=jnp.float32)
    # Conv1d(dim, 3*hidden, 1, bias=False) weight -> (3*hidden, dim)
    w_qkv = jax.random.normal(kq, (3 * hidden, dim), dtype=jnp.float32) * 0.1
    # Conv1d(hidden, dim, 1) weight/bias -> (dim, hidden), (dim,)
    w_out = jax.random.normal(ko, (dim, hidden), dtype=jnp.float32) * 0.1
    b_out = jax.random.normal(kb, (dim,), dtype=jnp.float32) * 0.1

    out = linear_attention(x, w_qkv, w_out, b_out,
                           heads=heads, dim_head=dim_head, tile_n=128)
    out = jax.block_until_ready(out)

    ref = linear_attention_ref(x, w_qkv, w_out, b_out,
                               heads=heads, dim_head=dim_head)

    assert out.shape == (B, dim, N)
    err = float(jnp.max(jnp.abs(out - ref)))
    assert jnp.allclose(out, ref, atol=1e-3, rtol=1e-3), err
    print("KERNEL_OK")
</pallas_src>

<mosaic_0001>
module attributes {stable_mosaic.version = 11 : i64} {
  func.func @_linear_attention_kernel(%arg0: i32, %arg1: i32, %arg2: i32, %arg3: memref<1x8x128xf32, #tpu.memory_space<vmem>>, %arg4: memref<32x8xf32, #tpu.memory_space<vmem>>, %arg5: memref<32x8xf32, #tpu.memory_space<vmem>>, %arg6: memref<32x8xf32, #tpu.memory_space<vmem>>, %arg7: memref<8x32xf32, #tpu.memory_space<vmem>>, %arg8: memref<8x1xf32, #tpu.memory_space<vmem>>, %arg9: memref<32x32xf32, #tpu.memory_space<vmem>>, %arg10: memref<1x128xf32, #tpu.memory_space<vmem>>, %arg11: memref<1x8x128xf32, #tpu.memory_space<vmem>>, %arg12: memref<32x1xf32, #tpu.memory_space<vmem>>, %arg13: memref<32x1xf32, #tpu.memory_space<vmem>>, %arg14: memref<32x32xf32, #tpu.memory_space<vmem>>, %arg15: memref<8x8xf32, #tpu.memory_space<vmem>>) attributes {dimension_semantics = [#tpu.dimension_semantics<parallel>, #tpu.dimension_semantics<arbitrary>, #tpu.dimension_semantics<arbitrary>], iteration_bounds = array<i64: 2, 2, 2>, scalar_prefetch = 0 : i64, scratch_operands = 4 : i64, tpu.core_type = #tpu.core_type<tc>, window_params = [{transform_indices = @transform_0, window_bounds = array<i64: 1, 8, 128>}, {pipeline_mode = #tpu.pipeline_mode<synchronous>, transform_indices = @transform_1, window_bounds = array<i64: 32, 8>}, {pipeline_mode = #tpu.pipeline_mode<synchronous>, transform_indices = @transform_2, window_bounds = array<i64: 32, 8>}, {pipeline_mode = #tpu.pipeline_mode<synchronous>, transform_indices = @transform_3, window_bounds = array<i64: 32, 8>}, {pipeline_mode = #tpu.pipeline_mode<synchronous>, transform_indices = @transform_4, window_bounds = array<i64: 8, 32>}, {pipeline_mode = #tpu.pipeline_mode<synchronous>, transform_indices = @transform_5, window_bounds = array<i64: 8, 1>}, {pipeline_mode = #tpu.pipeline_mode<synchronous>, transform_indices = @transform_6, window_bounds = array<i64: 32, 32>}, {transform_indices = @transform_7, window_bounds = array<i64: 1, 128>}, {transform_indices = @transform_8, window_bounds = array<i64: 1, 8, 128>}]} {
    %c0_i32 = arith.constant 0 : i32
    %0 = arith.cmpi eq, %arg1, %c0_i32 : i32
    %1 = arith.extui %0 : i1 to i32
    %c0_i32_0 = arith.constant 0 : i32
    %2 = arith.cmpi ne, %1, %c0_i32_0 : i32
    scf.if %2 {
      %c0_i32_2 = arith.constant 0 : i32
      %6 = arith.cmpi eq, %arg2, %c0_i32_2 : i32
      %7 = arith.extui %6 : i1 to i32
      %c0_i32_3 = arith.constant 0 : i32
      %8 = arith.cmpi ne, %7, %c0_i32_3 : i32
      scf.if %8 {
        %cst_28 = arith.constant 0xFF800000 : f32
        %40 = vector.broadcast %cst_28 : f32 to vector<32x1xf32>
        %c0_29 = arith.constant 0 : index
        %c0_30 = arith.constant 0 : index
        %41 = vector.load %arg12[%c0_29, %c0_30] : memref<32x1xf32, #tpu.memory_space<vmem>>, vector<32x1xf32>
        tpu.vector_store %arg12[%c0_29, %c0_30], %40 {strides = array<i32>} : memref<32x1xf32, #tpu.memory_space<vmem>>, vector<32x1xf32>,
        %cst_31 = arith.constant 0.000000e+00 : f32
        %42 = vector.broadcast %cst_31 : f32 to vector<32x1xf32>
        %c0_32 = arith.constant 0 : index
        %c0_33 = arith.constant 0 : index
        %43 = vector.load %arg13[%c0_32, %c0_33] : memref<32x1xf32, #tpu.memory_space<vmem>>, vector<32x1xf32>
        tpu.vector_store %arg13[%c0_32, %c0_33], %42 {strides = array<i32>} : memref<32x1xf32, #tpu.memory_space<vmem>>, vector<32x1xf32>,
        %cst_34 = arith.constant 0.000000e+00 : f32
        %44 = vector.broadcast %cst_34 : f32 to vector<32x32xf32>
        %c0_35 = arith.constant 0 : index
        %c0_36 = arith.constant 0 : index
        %45 = vector.load %arg14[%c0_35, %c0_36] : memref<32x32xf32, #tpu.memory_space<vmem>>, vector<32x32xf32>
        tpu.vector_store %arg14[%c0_35, %c0_36], %44 {strides = array<i32>} : memref<32x32xf32, #tpu.memory_space<vmem>>, vector<32x32xf32>,
      } else {
      }
      %c0 = arith.constant 0 : index
      %c0_4 = arith.constant 0 : index
      %c0_5 = arith.constant 0 : index
      %9 = vector.load %arg3[%c0, %c0_4, %c0_5] : memref<1x8x128xf32, #tpu.memory_space<vmem>>, vector<1x8x128xf32>
      %10 = vector.shape_cast %9 : vector<1x8x128xf32> to vector<8x128xf32>
      %c0_6 = arith.constant 0 : index
      %c0_7 = arith.constant 0 : index
      %11 = vector.load %arg5[%c0_6, %c0_7] : memref<32x8xf32, #tpu.memory_space<vmem>>, vector<32x8xf32>
      %cst = arith.constant dense<0.000000e+00> : vector<32x128xf32>
      %12 = tpu.matmul %11, %10, %cst {dimension_numbers = #tpu.dot_dimension_numbers<[1], [0], [0], [1], [0, 0, 1, 1], [], []>} : vector<32x8xf32>, vector<8x128xf32>, vector<32x128xf32> -> vector<32x128xf32>
      %c0_8 = arith.constant 0 : index
      %c0_9 = arith.constant 0 : index
      %13 = vector.load %arg6[%c0_8, %c0_9] : memref<32x8xf32, #tpu.memory_space<vmem>>, vector<32x8xf32>
      %cst_10 = arith.constant dense<0.000000e+00> : vector<32x128xf32>
      %14 = tpu.matmul %13, %10, %cst_10 {dimension_numbers = #tpu.dot_dimension_numbers<[1], [0], [0], [1], [0, 0, 1, 1], [], []>} : vector<32x8xf32>, vector<8x128xf32>, vector<32x128xf32> -> vector<32x128xf32>
      %c0_11 = arith.constant 0 : index
      %c0_12 = arith.constant 0 : index
      %15 = vector.load %arg12[%c0_11, %c0_12] : memref<32x1xf32, #tpu.memory_space<vmem>>, vector<32x1xf32>
      %cst_13 = arith.constant dense<0xFF800000> : vector<32xf32>
      %16 = vector.multi_reduction <maximumf>, %12, %cst_13 [1] : vector<32x128xf32> to vector<32xf32>
      %17 = vector.shape_cast %16 : vector<32xf32> to vector<32x1xf32>
      %18 = arith.maximumf %15, %17 : vector<32x1xf32>
      %19 = vector.broadcast %18 : vector<32x1xf32> to vector<32x128xf32>
      %20 = arith.subf %12, %19 : vector<32x128xf32>
      %21 = math.exp %20 : vector<32x128xf32>
      %c0_14 = arith.constant 0 : index
      %c0_15 = arith.constant 0 : index
      %22 = vector.load %arg10[%c0_14, %c0_15] : memref<1x128xf32, #tpu.memory_space<vmem>>, vector<1x128xf32>
      %23 = vector.broadcast %22 : vector<1x128xf32> to vector<32x128xf32>
      %24 = arith.mulf %21, %23 : vector<32x128xf32>
      %25 = arith.subf %15, %18 : vector<32x1xf32>
      %26 = math.exp %25 : vector<32x1xf32>
      %c0_16 = arith.constant 0 : index
      %c0_17 = arith.constant 0 : index
      %27 = vector.load %arg13[%c0_16, %c0_17] : memref<32x1xf32, #tpu.memory_space<vmem>>, vector<32x1xf32>
      %28 = arith.mulf %26, %27 : vector<32x1xf32>
      %cst_18 = arith.constant dense<0.000000e+00> : vector<32xf32>
      %29 = vector.multi_reduction <add>, %24, %cst_18 [1] : vector<32x128xf32> to vector<32xf32>
      %30 = vector.shape_cast %29 : vector<32xf32> to vector<32x1xf32>
      %31 = arith.addf %28, %30 : vector<32x1xf32>
      %c0_19 = arith.constant 0 : index
      %c0_20 = arith.constant 0 : index
      %32 = vector.load %arg13[%c0_19, %c0_20] : memref<32x1xf32, #tpu.memory_space<vmem>>, vector<32x1xf32>
      tpu.vector_store %arg13[%c0_19, %c0_20], %31 {strides = array<i32>} : memref<32x1xf32, #tpu.memory_space<vmem>>, vector<32x1xf32>,
      %cst_21 = arith.constant dense<0.000000e+00> : vector<32x32xf32>
      %33 = tpu.matmul %24, %14, %cst_21 {dimension_numbers = #tpu.dot_dimension_numbers<[1], [1], [0], [0], [0, 0, 1, 0], [], []>} : vector<32x128xf32>, vector<32x128xf32>, vector<32x32xf32> -> vector<32x32xf32>
      %c0_22 = arith.constant 0 : index
      %c0_23 = arith.constant 0 : index
      %34 = vector.load %arg14[%c0_22, %c0_23] : memref<32x32xf32, #tpu.memory_space<vmem>>, vector<32x32xf32>
      %35 = vector.broadcast %26 : vector<32x1xf32> to vector<32x32xf32>
      %36 = arith.mulf %35, %34 : vector<32x32xf32>
      %37 = arith.addf %36, %33 : vector<32x32xf32>
      %c0_24 = arith.constant 0 : index
      %c0_25 = arith.constant 0 : index
      %38 = vector.load %arg14[%c0_24, %c0_25] : memref<32x32xf32, #tpu.memory_space<vmem>>, vector<32x32xf32>
      tpu.vector_store %arg14[%c0_24, %c0_25], %37 {strides = array<i32>} : memref<32x32xf32, #tpu.memory_space<vmem>>, vector<32x32xf32>,
      %c0_26 = arith.constant 0 : index
      %c0_27 = arith.constant 0 : index
      %39 = vector.load %arg12[%c0_26, %c0_27] : memref<32x1xf32, #tpu.memory_space<vmem>>, vector<32x1xf32>
      tpu.vector_store %arg12[%c0_26, %c0_27], %18 {strides = array<i32>} : memref<32x1xf32, #tpu.memory_space<vmem>>, vector<32x1xf32>,
    } else {
    }
    %c1_i32 = arith.constant 1 : i32
    %3 = arith.cmpi eq, %arg1, %c1_i32 : i32
    %4 = arith.extui %3 : i1 to i32
    %c0_i32_1 = arith.constant 0 : i32
    %5 = arith.cmpi ne, %4, %c0_i32_1 : i32
    scf.if %5 {
      %c0_i32_2 = arith.constant 0 : i32
      %6 = arith.cmpi eq, %arg2, %c0_i32_2 : i32
      %7 = arith.extui %6 : i1 to i32
      %c0_i32_3 = arith.constant 0 : i32
      %8 = arith.cmpi ne, %7, %c0_i32_3 : i32
      scf.if %8 {
        %c0_13 = arith.constant 0 : index
        %c0_14 = arith.constant 0 : index
        %19 = vector.load %arg14[%c0_13, %c0_14] : memref<32x32xf32, #tpu.memory_space<vmem>>, vector<32x32xf32>
        %c0_15 = arith.constant 0 : index
        %c0_16 = arith.constant 0 : index
        %20 = vector.load %arg13[%c0_15, %c0_16] : memref<32x1xf32, #tpu.memory_space<vmem>>, vector<32x1xf32>
        %cst_17 = arith.constant 1.000000e+00 : f32
        %21 = vector.broadcast %cst_17 : f32 to vector<32x1xf32>
        %22 = arith.divf %21, %20 : vector<32x1xf32>
        %23 = vector.broadcast %22 : vector<32x1xf32> to vector<32x32xf32>
        %24 = arith.mulf %19, %23 : vector<32x32xf32>
        %c0_18 = arith.constant 0 : index
        %c0_19 = arith.constant 0 : index
        %25 = vector.load %arg9[%c0_18, %c0_19] : memref<32x32xf32, #tpu.memory_space<vmem>>, vector<32x32xf32>
        %26 = arith.mulf %24, %25 : vector<32x32xf32>
        %c0_20 = arith.constant 0 : index
        %c0_21 = arith.constant 0 : index
        %27 = vector.load %arg7[%c0_20, %c0_21] : memref<8x32xf32, #tpu.memory_space<vmem>>, vector<8x32xf32>
        %cst_22 = arith.constant dense<0.000000e+00> : vector<8x32xf32>
        %28 = tpu.matmul %27, %26, %cst_22 {dimension_numbers = #tpu.dot_dimension_numbers<[1], [1], [0], [0], [0, 0, 1, 0], [], []>} : vector<8x32xf32>, vector<32x32xf32>, vector<8x32xf32> -> vector<8x32xf32>
        %c0_23 = arith.constant 0 : index
        %c0_24 = arith.constant 0 : index
        %29 = vector.load %arg4[%c0_23, %c0_24] : memref<32x8xf32, #tpu.memory_space<vmem>>, vector<32x8xf32>
        %cst_25 = arith.constant dense<0.000000e+00> : vector<8x8xf32>
        %30 = tpu.matmul %28, %29, %cst_25 {dimension_numbers = #tpu.dot_dimension_numbers<[1], [0], [0], [1], [0, 0, 1, 1], [], []>} : vector<8x32xf32>, vector<32x8xf32>, vector<8x8xf32> -> vector<8x8xf32>
        %c0_26 = arith.constant 0 : index
        %c0_27 = arith.constant 0 : index
        %31 = vector.load %arg15[%c0_26, %c0_27] : memref<8x8xf32, #tpu.memory_space<vmem>>, vector<8x8xf32>
        tpu.vector_store %arg15[%c0_26, %c0_27], %30 {strides = array<i32>} : memref<8x8xf32, #tpu.memory_space<vmem>>, vector<8x8xf32>,
      } else {
      }
      %c0 = arith.constant 0 : index
      %c0_4 = arith.constant 0 : index
      %9 = vector.load %arg15[%c0, %c0_4] : memref<8x8xf32, #tpu.memory_space<vmem>>, vector<8x8xf32>
      %c0_5 = arith.constant 0 : index
      %c0_6 = arith.constant 0 : index
      %c0_7 = arith.constant 0 : index
      %10 = vector.load %arg3[%c0_5, %c0_6, %c0_7] : memref<1x8x128xf32, #tpu.memory_space<vmem>>, vector<1x8x128xf32>
      %11 = vector.shape_cast %10 : vector<1x8x128xf32> to vector<8x128xf32>
      %cst = arith.constant dense<0.000000e+00> : vector<8x128xf32>
      %12 = tpu.matmul %9, %11, %cst {dimension_numbers = #tpu.dot_dimension_numbers<[1], [0], [0], [1], [0, 0, 1, 1], [], []>} : vector<8x8xf32>, vector<8x128xf32>, vector<8x128xf32> -> vector<8x128xf32>
      %c0_8 = arith.constant 0 : index
      %c0_9 = arith.constant 0 : index
      %13 = vector.load %arg8[%c0_8, %c0_9] : memref<8x1xf32, #tpu.memory_space<vmem>>, vector<8x1xf32>
      %14 = vector.broadcast %13 : vector<8x1xf32> to vector<8x128xf32>
      %15 = arith.addf %12, %14 : vector<8x128xf32>
      %c0_10 = arith.constant 0 : index
      %c0_11 = arith.constant 0 : index
      %c0_12 = arith.constant 0 : index
      %16 = vector.load %arg11[%c0_10, %c0_11, %c0_12] : memref<1x8x128xf32, #tpu.memory_space<vmem>>, vector<1x8x128xf32>
      %17 = vector.shape_cast %16 : vector<1x8x128xf32> to vector<8x128xf32>
      %18 = vector.shape_cast %15 : vector<8x128xf32> to vector<1x8x128xf32>
      tpu.vector_store %arg11[%c0_10, %c0_11, %c0_12], %18 {strides = array<i32>} : memref<1x8x128xf32, #tpu.memory_space<vmem>>, vector<1x8x128xf32>,
    } else {
    }
    return
  }
  func.func @transform_0(%arg0: i32, %arg1: i32, %arg2: i32) -> (i32, i32, i32) {
    %c0_i32 = arith.constant 0 : i32
    %c0_i32_0 = arith.constant 0 : i32
    return %arg0, %c0_i32, %arg2 : i32, i32, i32
  }
  func.func @transform_1(%arg0: i32, %arg1: i32, %arg2: i32) -> (i32, i32) {
    %c0_i32 = arith.constant 0 : i32
    %c0_i32_0 = arith.constant 0 : i32
    %c0_i32_1 = arith.constant 0 : i32
    return %c0_i32, %c0_i32_0 : i32, i32
  }
  func.func @transform_2(%arg0: i32, %arg1: i32, %arg2: i32) -> (i32, i32) {
    %c0_i32 = arith.constant 0 : i32
    %c0_i32_0 = arith.constant 0 : i32
    %c0_i32_1 = arith.constant 0 : i32
    return %c0_i32, %c0_i32_0 : i32, i32
  }
  func.func @transform_3(%arg0: i32, %arg1: i32, %arg2: i32) -> (i32, i32) {
    %c0_i32 = arith.constant 0 : i32
    %c0_i32_0 = arith.constant 0 : i32
    %c0_i32_1 = arith.constant 0 : i32
    return %c0_i32, %c0_i32_0 : i32, i32
  }
  func.func @transform_4(%arg0: i32, %arg1: i32, %arg2: i32) -> (i32, i32) {
    %c0_i32 = arith.constant 0 : i32
    %c0_i32_0 = arith.constant 0 : i32
    %c0_i32_1 = arith.constant 0 : i32
    return %c0_i32, %c0_i32_0 : i32, i32
  }
  func.func @transform_5(%arg0: i32, %arg1: i32, %arg2: i32) -> (i32, i32) {
    %c0_i32 = arith.constant 0 : i32
    %c0_i32_0 = arith.constant 0 : i32
    %c0_i32_1 = arith.constant 0 : i32
    return %c0_i32, %c0_i32_0 : i32, i32
  }
  func.func @transform_6(%arg0: i32, %arg1: i32, %arg2: i32) -> (i32, i32) {
    %c0_i32 = arith.constant 0 : i32
    %c0_i32_0 = arith.constant 0 : i32
    %c0_i32_1 = arith.constant 0 : i32
    return %c0_i32, %c0_i32_0 : i32, i32
  }
  func.func @transform_7(%arg0: i32, %arg1: i32, %arg2: i32) -> (i32, i32) {
    %c0_i32 = arith.constant 0 : i32
    %c0_i32_0 = arith.constant 0 : i32
    return %c0_i32, %arg2 : i32, i32
  }
  func.func @transform_8(%arg0: i32, %arg1: i32, %arg2: i32) -> (i32, i32, i32) {
    %0 = arith.muli %arg2, %arg1 : i32
    %c0_i32 = arith.constant 0 : i32
    %c0_i32_0 = arith.constant 0 : i32
    return %arg0, %c0_i32, %0 : i32, i32, i32
  }
}

</mosaic_0001>

<llo_original>
// kernel: tpu_custom_call.1
$region0: #{tpu_custom_call.1}
  #allocation0 [shape = 'u32[]', space=smem, size = 0x4, offset = 0x4, fixed_abs, tag = 'smem constant byte address 0x4 - core index']
  #allocation1 [shape = 'u32[144,128]{1,0:T(1,128)}', space=vmem, size = 0x12000, scoped, tag = 'internal scratch']
  #allocation2 [shape = 'f32[32,1]{1,0:T(8,128)}', space=vmem, size = 0x4000, scoped, tag = 'scratch operand']
  #allocation3 [shape = 'f32[32,1]{1,0:T(8,128)}', space=vmem, size = 0x4000, scoped, tag = 'scratch operand']
  #allocation4 [shape = 'f32[32,32]{1,0:T(8,128)}', space=vmem, size = 0x4000, scoped, tag = 'scratch operand']
  #allocation5 [shape = 'f32[8,8]{1,0:T(8,128)}', space=vmem, size = 0x1000, scoped, tag = 'scratch operand']
  %s0 = inlined_call_operand.vmem [shape: f32[2,8,256], index: 0, kind: input, shape index: {}]
  %s1 = inlined_call_operand.vmem [shape: f32[32,8], index: 1, kind: input, shape index: {}]
  %s2 = inlined_call_operand.vmem [shape: f32[32,8], index: 2, kind: input, shape index: {}]
  %s3 = inlined_call_operand.vmem [shape: f32[32,8], index: 3, kind: input, shape index: {}]
  %s4 = inlined_call_operand.vmem [shape: f32[8,32], index: 4, kind: input, shape index: {}]
  %s5 = inlined_call_operand.vmem [shape: f32[8,1], index: 5, kind: input, shape index: {}]
  %s6 = inlined_call_operand.vmem [shape: f32[32,32], index: 6, kind: input, shape index: {}]
  %s7 = inlined_call_operand.vmem [shape: f32[1,256], index: 7, kind: input, shape index: {}]
  %s8 = inlined_call_operand.hbm [shape: f32[2,8,200], index: 8, kind: output, shape index: {}]
  %s9 = sld [smem:[#allocation0]]
  $region81: #{tpu_custom_call.1} parent=0
    _
  %s11 = ssub.s32 1, %s9
  %s12 = scalar_select 0, %s11, %s9
  $region1: #{tpu_custom_call.1} parent=0
    #allocation6 [shape = 'u8[8192]{0}', space=vmem, size = 0x2000, scoped, tag = 'output window, operand 0']
    #allocation7 [shape = 's32[2]{0}', space=sflag, size = 0x8, scoped, tag = 'scoped memory for tpu_custom_call.1']
    %13 = vsyncpa [#allocation7], 0
    %s14 = scalar_lea.sflag [#allocation7], 1
    %15 = vsyncpa %s14, 0
    loop: start=0, step=1, limit=10
    $region2: #{tpu_custom_call.1} parent=1 // loop_pre_header
      _
    $region3: #{tpu_custom_call.1} parent=1 // loop_header
      %s17 = sphi 0, %s21
      %p18 = scmp.ge.s32.totalorder %s17, 10
      %s24 = sphi 0, %s43
      %s25 = sphi 0, %s39
      %s26 = sphi 0, %s35
      %s27 = sphi 0, %s24
      %s28 = sphi 0, %s25
      %s29 = sphi 0, %s26
      %s30 = sphi 0, %s27
      %s31 = sphi 0, %s28
      %s32 = sphi 0, %s29
      %s48 = sphi 0, %s50
      %s51 = sphi 0, %s48
      %s52 = sphi 0, %s51
      %s68 = sphi 0, %s52
      %s72 = sphi 0, %s72
      %s74 = sphi 0, %s72
      %s75 = sphi 0, %s74
      %s89 = sphi 0, %s75
      %s93 = sphi 0, %s93
      %s95 = sphi 0, %s93
      %s96 = sphi 0, %s95
      %s110 = sphi 0, %s96
      %s114 = sphi 0, %s114
      %s116 = sphi 0, %s114
      %s117 = sphi 0, %s116
      %s131 = sphi 0, %s117
      %s135 = sphi 0, %s135
      %s137 = sphi 0, %s135
      %s138 = sphi 0, %s137
      %s152 = sphi 0, %s138
      %s156 = sphi 0, %s156
      %s158 = sphi 0, %s156
      %s159 = sphi 0, %s158
      %s173 = sphi 0, %s159
      %s177 = sphi 0, %s177
      %s179 = sphi 0, %s177
      %s180 = sphi 0, %s179
      %s194 = sphi 0, %s180
      %s200 = sphi 0, %s202
      %s203 = sphi 0, %s200
      %s204 = sphi 0, %s203
      %s220 = sphi 0, %s204
      %s230 = sphi 0, %s232
      %s233 = sphi 0, %s230
      %s234 = sphi 0, %s233
      %s250 = sphi 0, %s234
    $region4: #{tpu_custom_call.1} parent=1 // loop_header_branch
      %20 = sbr.rel (%p18) target = $region8
    $region5: #{tpu_custom_call.1} parent=1 // loop_body
      %s22 = ssub.s32 %s17, 1
      %s23 = ssub.s32 %s17, 2
      %s33 = sadd.s32 1, %s26
      %p34 = scmp.ge.s32.totalorder %s33, 2
      %s35 = scalar_select %p34, 0, %s33
      %s36 = sadd.s32 1, %s25
      %s37 = scalar_select %p34, %s36, %s25
      %p38 = scmp.ge.s32.totalorder %s37, 2
      %s39 = scalar_select %p38, 0, %s37
      %s40 = sadd.s32 1, %s24
      %s41 = scalar_select %p38, %s40, %s24
      %p42 = scmp.ge.s32.totalorder %s41, 2
      %s43 = scalar_select %p42, 0, %s41
      %s44 = ssub.s32 %s24, %s43
      %s45 = ssub.s32 %s26, %s35
      %s46 = sor.u32 %s44, %s45
      %p47 = scmp.eq.s32.totalorder %s46, 0
      %s49 = sadd.s32 %s48, 1
      %s50 = scalar_select %p47, %s48, %s49
      %p53 = pneg %p47
      %p54 = scmp.eq.s32.totalorder %s17, 7
      %p55 = por %p53, %p54
      %p56 = scmp.ne.s32.totalorder %s48, %s51
      %p57 = scmp.eq.s32.totalorder %s17, 0
      %p58 = por %p56, %p57
      %p59 = scmp.ne.s32.totalorder %s48, %s51
      %p60 = scmp.eq.s32.totalorder %s22, 7
      %p61 = por %p59, %p60
      %p62 = scmp.ne.s32.totalorder %s51, %s52
      %p63 = scmp.eq.s32.totalorder %s22, 0
      %p64 = por %p62, %p63
      %p65 = scmp.ne.s32.totalorder %s51, %s52
      %p66 = scmp.eq.s32.totalorder %s23, 7
      %p67 = por %p65, %p66
      %p69 = scmp.ne.s32.totalorder %s52, %s68
      %p70 = scmp.eq.s32.totalorder %s23, 0
      %p71 = por %p69, %p70
      %s73 = sadd.s32 %s72, 1
      %p76 = scmp.eq.s32.totalorder %s17, 7
      %p77 = scmp.ne.s32.totalorder %s72, %s74
      %p78 = scmp.eq.s32.totalorder %s17, 0
      %p79 = por %p77, %p78
      %p80 = scmp.ne.s32.totalorder %s72, %s74
      %p81 = scmp.eq.s32.totalorder %s22, 7
      %p82 = por %p80, %p81
      %p83 = scmp.ne.s32.totalorder %s74, %s75
      %p84 = scmp.eq.s32.totalorder %s22, 0
      %p85 = por %p83, %p84
      %p86 = scmp.ne.s32.totalorder %s74, %s75
      %p87 = scmp.eq.s32.totalorder %s23, 7
      %p88 = por %p86, %p87
      %p90 = scmp.ne.s32.totalorder %s75, %s89
      %p91 = scmp.eq.s32.totalorder %s23, 0
      %p92 = por %p90, %p91
      %s94 = sadd.s32 %s93, 1
      %p97 = scmp.eq.s32.totalorder %s17, 7
      %p98 = scmp.ne.s32.totalorder %s93, %s95
      %p99 = scmp.eq.s32.totalorder %s17, 0
      %p100 = por %p98, %p99
      %p101 = scmp.ne.s32.totalorder %s93, %s95
      %p102 = scmp.eq.s32.totalorder %s22, 7
      %p103 = por %p101, %p102
      %p104 = scmp.ne.s32.totalorder %s95, %s96
      %p105 = scmp.eq.s32.totalorder %s22, 0
      %p106 = por %p104, %p105
      %p107 = scmp.ne.s32.totalorder %s95, %s96
      %p108 = scmp.eq.s32.totalorder %s23, 7
      %p109 = por %p107, %p108
      %p111 = scmp.ne.s32.totalorder %s96, %s110
      %p112 = scmp.eq.s32.totalorder %s23, 0
      %p113 = por %p111, %p112
      %s115 = sadd.s32 %s114, 1
      %p118 = scmp.eq.s32.totalorder %s17, 7
      %p119 = scmp.ne.s32.totalorder %s114, %s116
      %p120 = scmp.eq.s32.totalorder %s17, 0
      %p121 = por %p119, %p120
      %p122 = scmp.ne.s32.totalorder %s114, %s116
      %p123 = scmp.eq.s32.totalorder %s22, 7
      %p124 = por %p122, %p123
      %p125 = scmp.ne.s32.totalorder %s116, %s117
      %p126 = scmp.eq.s32.totalorder %s22, 0
      %p127 = por %p125, %p126
      %p128 = scmp.ne.s32.totalorder %s116, %s117
      %p129 = scmp.eq.s32.totalorder %s23, 7
      %p130 = por %p128, %p129
      %p132 = scmp.ne.s32.totalorder %s117, %s131
      %p133 = scmp.eq.s32.totalorder %s23, 0
      %p134 = por %p132, %p133
      %s136 = sadd.s32 %s135, 1
      %p139 = scmp.eq.s32.totalorder %s17, 7
      %p140 = scmp.ne.s32.totalorder %s135, %s137
      %p141 = scmp.eq.s32.totalorder %s17, 0
      %p142 = por %p140, %p141
      %p143 = scmp.ne.s32.totalorder %s135, %s137
      %p144 = scmp.eq.s32.totalorder %s22, 7
      %p145 = por %p143, %p144
      %p146 = scmp.ne.s32.totalorder %s137, %s138
      %p147 = scmp.eq.s32.totalorder %s22, 0
      %p148 = por %p146, %p147
      %p149 = scmp.ne.s32.totalorder %s137, %s138
      %p150 = scmp.eq.s32.totalorder %s23, 7
      %p151 = por %p149, %p150
      %p153 = scmp.ne.s32.totalorder %s138, %s152
      %p154 = scmp.eq.s32.totalorder %s23, 0
      %p155 = por %p153, %p154
      %s157 = sadd.s32 %s156, 1
      %p160 = scmp.eq.s32.totalorder %s17, 7
      %p161 = scmp.ne.s32.totalorder %s156, %s158
      %p162 = scmp.eq.s32.totalorder %s17, 0
      %p163 = por %p161, %p162
      %p164 = scmp.ne.s32.totalorder %s156, %s158
      %p165 = scmp.eq.s32.totalorder %s22, 7
      %p166 = por %p164, %p165
      %p167 = scmp.ne.s32.totalorder %s158, %s159
      %p168 = scmp.eq.s32.totalorder %s22, 0
      %p169 = por %p167, %p168
      %p170 = scmp.ne.s32.totalorder %s158, %s159
      %p171 = scmp.eq.s32.totalorder %s23, 7
      %p172 = por %p170, %p171
      %p174 = scmp.ne.s32.totalorder %s159, %s173
      %p175 = scmp.eq.s32.totalorder %s23, 0
      %p176 = por %p174, %p175
      %s178 = sadd.s32 %s177, 1
      %p181 = scmp.eq.s32.totalorder %s17, 7
      %p182 = scmp.ne.s32.totalorder %s177, %s179
      %p183 = scmp.eq.s32.totalorder %s17, 0
      %p184 = por %p182, %p183
      %p185 = scmp.ne.s32.totalorder %s177, %s179
      %p186 = scmp.eq.s32.totalorder %s22, 7
      %p187 = por %p185, %p186
      %p188 = scmp.ne.s32.totalorder %s179, %s180
      %p189 = scmp.eq.s32.totalorder %s22, 0
      %p190 = por %p188, %p189
      %p191 = scmp.ne.s32.totalorder %s179, %s180
      %p192 = scmp.eq.s32.totalorder %s23, 7
      %p193 = por %p191, %p192
      %p195 = scmp.ne.s32.totalorder %s180, %s194
      %p196 = scmp.eq.s32.totalorder %s23, 0
      %p197 = por %p195, %p196
      %s198 = ssub.s32 %s26, %s35
      %p199 = scmp.eq.s32.totalorder %s198, 0
      %s201 = sadd.s32 %s200, 1
      %s202 = scalar_select %p199, %s200, %s201
      %p205 = pneg %p199
      %p206 = scmp.eq.s32.totalorder %s17, 7
      %p207 = por %p205, %p206
      %p208 = scmp.ne.s32.totalorder %s200, %s203
      %p209 = scmp.eq.s32.totalorder %s17, 0
      %p210 = por %p208, %p209
      %p211 = scmp.ne.s32.totalorder %s200, %s203
      %p212 = scmp.eq.s32.totalorder %s22, 7
      %p213 = por %p211, %p212
      %p214 = scmp.ne.s32.totalorder %s203, %s204
      %p215 = scmp.eq.s32.totalorder %s22, 0
      %p216 = por %p214, %p215
      %p217 = scmp.ne.s32.totalorder %s203, %s204
      %p218 = scmp.eq.s32.totalorder %s23, 7
      %p219 = por %p217, %p218
      %p221 = scmp.ne.s32.totalorder %s204, %s220
      %p222 = scmp.eq.s32.totalorder %s23, 0
      %p223 = por %p221, %p222
      %s224 = smul.u32 %s26, %s25
      %s225 = smul.u32 %s35, %s39
      %s226 = ssub.s32 %s24, %s43
      %s227 = ssub.s32 %s224, %s225
      %s228 = sor.u32 %s226, %s227
      %p229 = scmp.eq.s32.totalorder %s228, 0
      %s231 = sadd.s32 %s230, 1
      %s232 = scalar_select %p229, %s230, %s231
      %p235 = pneg %p229
      %p236 = scmp.eq.s32.totalorder %s17, 7
      %p237 = por %p235, %p236
      %p238 = scmp.ne.s32.totalorder %s230, %s233
      %p239 = scmp.eq.s32.totalorder %s17, 0
      %p240 = por %p238, %p239
      %p241 = scmp.ne.s32.totalorder %s230, %s233
      %p242 = scmp.eq.s32.totalorder %s22, 7
      %p243 = por %p241, %p242
      %p244 = scmp.ne.s32.totalorder %s233, %s234
      %p245 = scmp.eq.s32.totalorder %s22, 0
      %p246 = por %p244, %p245
      %p247 = scmp.ne.s32.totalorder %s233, %s234
      %p248 = scmp.eq.s32.totalorder %s23, 7
      %p249 = por %p247, %p248
      %p251 = scmp.ne.s32.totalorder %s234, %s250
      %p252 = scmp.eq.s32.totalorder %s23, 0
      %p253 = por %p251, %p252
      %p254 = scmp.le.s32.totalorder 1, %s17
      %p255 = scmp.lt.s32.totalorder %s17, 9
      %p256 = pnand %p254, %p255
      %p257 = pneg %p256
      // Predicated region
      $region9: #{tpu_custom_call.1} parent=5 // pred_check
        _
      $region10: #{tpu_custom_call.1} parent=5 // pred_check_branch
        %259 = sbr.rel (%p256) target = $region12
      $region11: #{tpu_custom_call.1} parent=5 // pred_region
        %s260 = ssub.s32 %s17, 1
        // Predicated region
        $region13: #{tpu_custom_call.1} parent=11 // pred_check
          %p261 = pneg %p85
        $region14: #{tpu_custom_call.1} parent=11 // pred_check_branch
          %263 = sbr.rel (%p261) target = $region16
        $region15: #{tpu_custom_call.1} parent=11 // pred_region
          _
        $region16: #{tpu_custom_call.1} parent=11 // pred_fallthru
          _
        // Predicated region
        $region17: #{tpu_custom_call.1} parent=11 // pred_check
          %p264 = pneg %p106
        $region18: #{tpu_custom_call.1} parent=11 // pred_check_branch
          %266 = sbr.rel (%p264) target = $region20
        $region19: #{tpu_custom_call.1} parent=11 // pred_region
          _
        $region20: #{tpu_custom_call.1} parent=11 // pred_fallthru
          _
        // Predicated region
        $region21: #{tpu_custom_call.1} parent=11 // pred_check
          %p267 = pneg %p127
        $region22: #{tpu_custom_call.1} parent=11 // pred_check_branch
          %269 = sbr.rel (%p267) target = $region24
        $region23: #{tpu_custom_call.1} parent=11 // pred_region
          _
        $region24: #{tpu_custom_call.1} parent=11 // pred_fallthru
          _
        // Predicated region
        $region25: #{tpu_custom_call.1} parent=11 // pred_check
          %p270 = pneg %p148
        $region26: #{tpu_custom_call.1} parent=11 // pred_check_branch
          %272 = sbr.rel (%p270) target = $region28
        $region27: #{tpu_custom_call.1} parent=11 // pred_region
          _
        $region28: #{tpu_custom_call.1} parent=11 // pred_fallthru
          _
        // Predicated region
        $region29: #{tpu_custom_call.1} parent=11 // pred_check
          %p273 = pneg %p169
        $region30: #{tpu_custom_call.1} parent=11 // pred_check_branch
          %275 = sbr.rel (%p273) target = $region32
        $region31: #{tpu_custom_call.1} parent=11 // pred_region
          _
        $region32: #{tpu_custom_call.1} parent=11 // pred_fallthru
          _
        // Predicated region
        $region33: #{tpu_custom_call.1} parent=11 // pred_check
          %p276 = pneg %p190
        $region34: #{tpu_custom_call.1} parent=11 // pred_check_branch
          %278 = sbr.rel (%p276) target = $region36
        $region35: #{tpu_custom_call.1} parent=11 // pred_region
          _
        $region36: #{tpu_custom_call.1} parent=11 // pred_fallthru
          _
      $region12: #{tpu_custom_call.1} parent=5 // pred_fallthru
        _
      %p279 = scmp.lt.s32.totalorder %s17, 8
      // Predicated region
      $region37: #{tpu_custom_call.1} parent=5 // pred_check
        %p280 = pneg %p279
      $region38: #{tpu_custom_call.1} parent=5 // pred_check_branch
        %282 = sbr.rel (%p280) target = $region40
      $region39: #{tpu_custom_call.1} parent=5 // pred_region
        // Predicated region
        $region41: #{tpu_custom_call.1} parent=39 // pred_check
          %p283 = pneg %p58
        $region42: #{tpu_custom_call.1} parent=39 // pred_check_branch
          %285 = sbr.rel (%p283) target = $region44
        $region43: #{tpu_custom_call.1} parent=39 // pred_region
          %p286 = scmp.lt.s32.totalorder %s24, 1
          %s287 = scalar_select %p286, %s24, 1
          %p288 = scmp.lt.s32.totalorder %s26, 1
          %s289 = scalar_select %p288, %s26, 1
          %s290 = smul.addr %s287, 2
          %s291 = sadd.s32 %s289, %s290
          %s292 = smul.addr %s291, 8
          %s293 = scalar_lea.vmem %s0, %s292
        $region44: #{tpu_custom_call.1} parent=39 // pred_fallthru
          _
        // Predicated region
        $region45: #{tpu_custom_call.1} parent=39 // pred_check
          %p294 = pneg %p210
        $region46: #{tpu_custom_call.1} parent=39 // pred_check_branch
          %296 = sbr.rel (%p294) target = $region48
        $region47: #{tpu_custom_call.1} parent=39 // pred_region
          %p297 = scmp.lt.s32.totalorder %s26, 1
          %s298 = scalar_select %p297, %s26, 1
          %s299 = scalar_lea.vmem %s7, %s298
        $region48: #{tpu_custom_call.1} parent=39 // pred_fallthru
          _
      $region40: #{tpu_custom_call.1} parent=5 // pred_fallthru
        _
      %p300 = scmp.le.s32.totalorder 1, %s17
      %p301 = scmp.lt.s32.totalorder %s17, 9
      %p302 = pnand %p300, %p301
      %p303 = pneg %p302
      // Predicated region
      $region49: #{tpu_custom_call.1} parent=5 // pred_check
        _
      $region50: #{tpu_custom_call.1} parent=5 // pred_check_branch
        %305 = sbr.rel (%p302) target = $region52
      $region51: #{tpu_custom_call.1} parent=5 // pred_region
        %s306 = ssub.s32 %s17, 1
        %p307 = scmp.lt.s32.totalorder %s27, 1
        %s308 = scalar_select %p307, %s27, 1
        %p309 = scmp.lt.s32.totalorder %s29, 1
        %s310 = scalar_select %p309, %s29, 1
        %s311 = smul.addr %s308, 2
        %s312 = sadd.s32 %s310, %s311
        %s313 = smul.addr %s312, 8
        %s314 = scalar_lea.vmem %s0, %s313
        %p315 = pneg %p64
        %p316 = pneg %p61
        %p317 = pneg %p85
        %p318 = pneg %p82
        %p319 = pneg %p106
        %p320 = pneg %p103
        %p321 = pneg %p127
        %p322 = pneg %p124
        %p323 = pneg %p148
        %p324 = pneg %p145
        %p325 = pneg %p169
        %p326 = pneg %p166
        %p327 = pneg %p190
        %p328 = pneg %p187
        %p329 = scmp.lt.s32.totalorder %s29, 1
        %s330 = scalar_select %p329, %s29, 1
        %s331 = scalar_lea.vmem %s7, %s330
        %p332 = pneg %p216
        %p333 = pneg %p213
        %p334 = pneg %p246
        %p335 = pneg %p243
        %s336 = sand.u32 %s233, 1
        %s337 = scalar_lea.sflag [#allocation7], %s336
        %s338 = sand.u32 %s233, 1
        %s339 = smul.addr %s338, 8
        %s340 = scalar_lea.vmem [#allocation6], %s339
        %p341 = scmp.lt.s32.totalorder %s27, 1
        %s342 = scalar_select %p341, %s27, 1
        %p343 = scmp.lt.s32.totalorder %s29, 1
        %s344 = scalar_select %p343, %s29, 1
        %s345 = smul.addr %s342, 2
        %s346 = sadd.s32 %s344, %s345
        %s347 = smul.addr %s346, 8
        %s348 = scalar_lea.vmem %s0, %s347
        %p349 = scmp.lt.s32.totalorder %s29, 1
        %s350 = scalar_select %p349, %s29, 1
        %s351 = scalar_lea.vmem %s7, %s350
        %s352 = smul.u32 %s29, %s28
        %p353 = scmp.eq.s32.totalorder %s28, 0
        // Predicated region
        $region53: #{tpu_custom_call.1} parent=51 // pred_check
          %p354 = pneg %p353
        $region54: #{tpu_custom_call.1} parent=51 // pred_check_branch
          %356 = sbr.rel (%p354) target = $region56
        $region55: #{tpu_custom_call.1} parent=51 // pred_region
          %p357 = scmp.eq.s32.totalorder %s29, 0
          // Predicated region
          $region57: #{tpu_custom_call.1} parent=55 // pred_check
            %p358 = pneg %p357
          $region58: #{tpu_custom_call.1} parent=55 // pred_check_branch
            %360 = sbr.rel (%p358) target = $region60
          $region59: #{tpu_custom_call.1} parent=55 // pred_region
            %vm361 = vcmask 7168
            %362 = vst.msk [vmem:[#allocation2] sm:$0xff] %vm361, -inf
            %363 = vst.msk [vmem:[#allocation2 + $0x8] sm:$0xff] %vm361, -inf
            %364 = vst.msk [vmem:[#allocation2 + $0x10] sm:$0xff] %vm361, -inf
            %365 = vst.msk [vmem:[#allocation2 + $0x18] sm:$0xff] %vm361, -inf
            %366 = vst.msk [vmem:[#allocation3] sm:$0xff] %vm361, 0.0
            %367 = vst.msk [vmem:[#allocation3 + $0x8] sm:$0xff] %vm361, 0.0
            %368 = vst.msk [vmem:[#allocation3 + $0x10] sm:$0xff] %vm361, 0.0
            %369 = vst.msk [vmem:[#allocation3 + $0x18] sm:$0xff] %vm361, 0.0
            %vm370 = vcmask 261120
            %371 = vst.msk [vmem:[#allocation4] sm:$0xff] %vm370, 0.0
            %372 = vst.msk [vmem:[#allocation4 + $0x8] sm:$0xff] %vm370, 0.0
            %373 = vst.msk [vmem:[#allocation4 + $0x10] sm:$0xff] %vm370, 0.0
            %374 = vst.msk [vmem:[#allocation4 + $0x18] sm:$0xff] %vm370, 0.0
          $region60: #{tpu_custom_call.1} parent=55 // pred_fallthru
            _
          %v375 = vld [vmem:[%s348] sm:$0xff]
          %v376 = vld [vmem:[%s2] sm:$0xff]
          %v377 = vld [vmem:[%s2 + $0x8] sm:$0xff]
          %v378 = vld [vmem:[%s2 + $0x10] sm:$0xff]
          %v379 = vld [vmem:[%s2 + $0x18] sm:$0xff]
          %vm380 = vcmask 64512
          %v382 = vsel %vm380, %v376, 0
          %v385 = vsel %vm380, %v377, 0
          %v388 = vsel %vm380, %v378, 0
          %v391 = vsel %vm380, %v379, 0
          %393 = vmatprep.subr.mxu0 0.0
          %394 = vmatpush1.msra.mxu0 0.0
          %395 = vmatprep.subr.mxu0 0.0
          %396 = vmatpush1.msra.mxu0 0.0
          %397 = vmatprep.subr.mxu0 0.0
          %398 = vmatpush1.msra.mxu0 0.0
          %399 = vmatprep.subr.mxu0 0.0
          %400 = vmatpush1.msra.mxu0 0.0
          %401 = vmatprep.subr.mxu0 0.0
          %402 = vmatpush1.msra.mxu0 0.0
          %403 = vmatprep.subr.mxu0 0.0
          %404 = vmatpush1.msra.mxu0 0.0
          %405 = vmatprep.subr.mxu0 0.0
          %406 = vmatpush1.msra.mxu0 0.0
          %407 = vmatprep.subr.mxu0 0.0
          %408 = vmatpush1.msra.mxu0 0.0
          %409 = vmatprep.subr.mxu0 0.0
          %410 = vmatpush1.msra.mxu0 0.0
          %411 = vmatprep.subr.mxu0 0.0
          %412 = vmatpush1.msra.mxu0 0.0
          %413 = vmatprep.subr.mxu0 0.0
          %414 = vmatpush1.msra.mxu0 0.0
          %415 = vmatprep.subr.mxu0 0.0
          %416 = vmatpush1.msra.mxu0 0.0
          %417 = vmatprep.subr.mxu0 0.0
          %418 = vmatpush1.msra.mxu0 0.0
          %419 = vmatprep.subr.mxu0 0.0
          %420 = vmatpush1.msra.mxu0 0.0
          %421 = vmatprep.subr.mxu0 0.0
          %422 = vmatpush1.msra.mxu0 0.0
          %423 = vmatprep.subr.mxu0 0.0
          %424 = vmatpush1.msra.mxu0 %v375
          %425 = vmatprep.subr.mxu0 0.0
          %426 = vmatpush2.msra.mxu0 0.0
          %427 = vmatprep.subr.mxu0 0.0
          %428 = vmatpush2.msra.mxu0 0.0
          %429 = vmatprep.subr.mxu0 0.0
          %430 = vmatpush2.msra.mxu0 0.0
          %431 = vmatprep.subr.mxu0 0.0
          %432 = vmatpush2.msra.mxu0 0.0
          %433 = vmatprep.subr.mxu0 0.0
          %434 = vmatpush2.msra.mxu0 0.0
          %435 = vmatprep.subr.mxu0 0.0
          %436 = vmatpush2.msra.mxu0 0.0
          %437 = vmatprep.subr.mxu0 0.0
          %438 = vmatpush2.msra.mxu0 0.0
          %439 = vmatprep.subr.mxu0 0.0
          %440 = vmatpush2.msra.mxu0 0.0
          %441 = vmatprep.subr.mxu0 0.0
          %442 = vmatpush2.msra.mxu0 0.0
          %443 = vmatprep.subr.mxu0 0.0
          %444 = vmatpush2.msra.mxu0 0.0
          %445 = vmatprep.subr.mxu0 0.0
          %446 = vmatpush2.msra.mxu0 0.0
          %447 = vmatprep.subr.mxu0 0.0
          %448 = vmatpush2.msra.mxu0 0.0
          %449 = vmatprep.subr.mxu0 0.0
          %450 = vmatpush2.msra.mxu0 0.0
          %451 = vmatprep.subr.mxu0 0.0
          %452 = vmatpush2.msra.mxu0 0.0
          %453 = vmatprep.subr.mxu0 0.0
          %454 = vmatpush2.msra.mxu0 0.0
          %455 = vmatprep.subr.mxu0 0.0
          %456 = vmatpush2.msra.mxu0 0.0
          %457 = vmatprep.mubr.f32.mxu0 0.0
          %458 = vmatmul.mubr.f32.gmra.mxu0 %v382
          %v459 = vpop.f32.mrf.mxu0
          %v460 = vadd.f32 0.0, %v459
          %v461 = vpop.f32.mrf.mxu0
          %462 = vmatprep.mubr.f32.mxu0 0.0
          %463 = vmatmul.mubr.f32.gmra.mxu0 %v385
          %v464 = vpop.f32.mrf.mxu0
          %v465 = vadd.f32 0.0, %v464
          %v466 = vpop.f32.mrf.mxu0
          %467 = vmatprep.mubr.f32.mxu0 0.0
          %468 = vmatmul.mubr.f32.gmra.mxu0 %v388
          %v469 = vpop.f32.mrf.mxu0
          %v470 = vadd.f32 0.0, %v469
          %v471 = vpop.f32.mrf.mxu0
          %472 = vmatprep.mubr.f32.mxu0 0.0
          %473 = vmatmul.mubr.f32.gmra.mxu0 %v391
          %v474 = vpop.f32.mrf.mxu0
          %v475 = vadd.f32 0.0, %v474
          %v476 = vpop.f32.mrf.mxu0
          %477 = vdwg.mxu0
          %v478 = vld [vmem:[%s3] sm:$0xff]
          %v479 = vld [vmem:[%s3 + $0x8] sm:$0xff]
          %v480 = vld [vmem:[%s3 + $0x10] sm:$0xff]
          %v481 = vld [vmem:[%s3 + $0x18] sm:$0xff]
          %v483 = vsel %vm380, %v478, 0
          %v486 = vsel %vm380, %v479, 0
          %v489 = vsel %vm380, %v480, 0
          %v492 = vsel %vm380, %v481, 0
          %494 = vmatprep.subr.mxu0 0.0
          %495 = vmatpush1.msra.mxu0 0.0
          %496 = vmatprep.subr.mxu0 0.0
          %497 = vmatpush1.msra.mxu0 0.0
          %498 = vmatprep.subr.mxu0 0.0
          %499 = vmatpush1.msra.mxu0 0.0
          %500 = vmatprep.subr.mxu0 0.0
          %501 = vmatpush1.msra.mxu0 0.0
          %502 = vmatprep.subr.mxu0 0.0
          %503 = vmatpush1.msra.mxu0 0.0
          %504 = vmatprep.subr.mxu0 0.0
          %505 = vmatpush1.msra.mxu0 0.0
          %506 = vmatprep.subr.mxu0 0.0
          %507 = vmatpush1.msra.mxu0 0.0
          %508 = vmatprep.subr.mxu0 0.0
          %509 = vmatpush1.msra.mxu0 0.0
          %510 = vmatprep.subr.mxu0 0.0
          %511 = vmatpush1.msra.mxu0 0.0
          %512 = vmatprep.subr.mxu0 0.0
          %513 = vmatpush1.msra.mxu0 0.0
          %514 = vmatprep.subr.mxu0 0.0
          %515 = vmatpush1.msra.mxu0 0.0
          %516 = vmatprep.subr.mxu0 0.0
          %517 = vmatpush1.msra.mxu0 0.0
          %518 = vmatprep.subr.mxu0 0.0
          %519 = vmatpush1.msra.mxu0 0.0
          %520 = vmatprep.subr.mxu0 0.0
          %521 = vmatpush1.msra.mxu0 0.0
          %522 = vmatprep.subr.mxu0 0.0
          %523 = vmatpush1.msra.mxu0 0.0
          %524 = vmatprep.subr.mxu0 0.0
          %525 = vmatpush1.msra.mxu0 %v375
          %526 = vmatprep.subr.mxu0 0.0
          %527 = vmatpush2.msra.mxu0 0.0
          %528 = vmatprep.subr.mxu0 0.0
          %529 = vmatpush2.msra.mxu0 0.0
          %530 = vmatprep.subr.mxu0 0.0
          %531 = vmatpush2.msra.mxu0 0.0
          %532 = vmatprep.subr.mxu0 0.0
          %533 = vmatpush2.msra.mxu0 0.0
          %534 = vmatprep.subr.mxu0 0.0
          %535 = vmatpush2.msra.mxu0 0.0
          %536 = vmatprep.subr.mxu0 0.0
          %537 = vmatpush2.msra.mxu0 0.0
          %538 = vmatprep.subr.mxu0 0.0
          %539 = vmatpush2.msra.mxu0 0.0
          %540 = vmatprep.subr.mxu0 0.0
          %541 = vmatpush2.msra.mxu0 0.0
          %542 = vmatprep.subr.mxu0 0.0
          %543 = vmatpush2.msra.mxu0 0.0
          %544 = vmatprep.subr.mxu0 0.0
          %545 = vmatpush2.msra.mxu0 0.0
          %546 = vmatprep.subr.mxu0 0.0
          %547 = vmatpush2.msra.mxu0 0.0
          %548 = vmatprep.subr.mxu0 0.0
          %549 = vmatpush2.msra.mxu0 0.0
          %550 = vmatprep.subr.mxu0 0.0
          %551 = vmatpush2.msra.mxu0 0.0
          %552 = vmatprep.subr.mxu0 0.0
          %553 = vmatpush2.msra.mxu0 0.0
          %554 = vmatprep.subr.mxu0 0.0
          %555 = vmatpush2.msra.mxu0 0.0
          %556 = vmatprep.subr.mxu0 0.0
          %557 = vmatpush2.msra.mxu0 0.0
          %558 = vmatprep.mubr.f32.mxu0 0.0
          %559 = vmatmul.mubr.f32.gmra.mxu0 %v483
          %v560 = vpop.f32.mrf.mxu0
          %v561 = vadd.f32 0.0, %v560
          %v562 = vpop.f32.mrf.mxu0
          %563 = vmatprep.mubr.f32.mxu0 0.0
          %564 = vmatmul.mubr.f32.gmra.mxu0 %v486
          %v565 = vpop.f32.mrf.mxu0
          %v566 = vadd.f32 0.0, %v565
          %v567 = vpop.f32.mrf.mxu0
          %568 = vmatprep.mubr.f32.mxu0 0.0
          %569 = vmatmul.mubr.f32.gmra.mxu0 %v489
          %v570 = vpop.f32.mrf.mxu0
          %v571 = vadd.f32 0.0, %v570
          %v572 = vpop.f32.mrf.mxu0
          %573 = vmatprep.mubr.f32.mxu0 0.0
          %574 = vmatmul.mubr.f32.gmra.mxu0 %v492
          %v575 = vpop.f32.mrf.mxu0
          %v576 = vadd.f32 0.0, %v575
          %v577 = vpop.f32.mrf.mxu0
          %578 = vdwg.mxu0
          %v579 = vld [vmem:[#allocation2] sm:$0xff]
          %v580 = vld [vmem:[#allocation2 + $0x8] sm:$0xff]
          %v581 = vld [vmem:[#allocation2 + $0x10] sm:$0xff]
          %v582 = vld [vmem:[#allocation2 + $0x18] sm:$0xff]
          %583 = vmax.xlane.f32.xlu0 %v460
          %v584 = vpop.xlane.xlu0 %583
          %585 = vmax.xlane.f32.xlu0 %v465
          %v586 = vpop.xlane.xlu0 %585
          %587 = vmax.xlane.f32.xlu0 %v470
          %v588 = vpop.xlane.xlu0 %587
          %589 = vmax.xlane.f32.xlu0 %v475
          %v590 = vpop.xlane.xlu0 %589
          %v591 = vmax.f32 %v579, %v584
          %v592 = vmax.f32 %v580, %v586
          %v593 = vmax.f32 %v581, %v588
          %v594 = vmax.f32 %v582, %v590
          %596 = vset.pattern.permute.xlu0 0
          %597 = vperm.xlu0 %596, %v591
          %v598 = vpop.permute.xlu0 %597
          %601 = vset.pattern.permute.xlu0 0
          %602 = vperm.xlu0 %601, %v592
          %v603 = vpop.permute.xlu0 %602
          %606 = vset.pattern.permute.xlu0 0
          %607 = vperm.xlu0 %606, %v593
          %v608 = vpop.permute.xlu0 %607
          %611 = vset.pattern.permute.xlu0 0
          %612 = vperm.xlu0 %611, %v594
          %v613 = vpop.permute.xlu0 %612
          %v615 = vsub.f32 %v460, %v598
          %v616 = vsub.f32 %v465, %v603
          %v617 = vsub.f32 %v470, %v608
          %v618 = vsub.f32 %v475, %v613
          %v619 = vmul.f32 %v615, 1.442695
          %v620 = vpow.pop %v619
          %v621 = vmul.f32 %v616, 1.442695
          %v622 = vpow.pop %v621
          %v623 = vmul.f32 %v617, 1.442695
          %v624 = vpow.pop %v623
          %v625 = vmul.f32 %v618, 1.442695
          %v626 = vpow.pop %v625
          %v627 = vld [vmem:[%s351] sm:$0x1]
          %v629 = vlaneseq
          %v630 = vshrl.u32 %v629, 7
          %v631 = vsub.s32 0, %v630
          %v632 = vrot.slane %v627, %v631
          %v634 = vmul.f32 %v620, %v632
          %v635 = vmul.f32 %v622, %v632
          %v636 = vmul.f32 %v624, %v632
          %v637 = vmul.f32 %v626, %v632
          %v638 = vsub.f32 %v579, %v591
          %v639 = vsub.f32 %v580, %v592
          %v640 = vsub.f32 %v581, %v593
          %v641 = vsub.f32 %v582, %v594
          %v642 = vmul.f32 %v638, 1.442695
          %v643 = vpow.pop %v642
          %v644 = vmul.f32 %v639, 1.442695
          %v645 = vpow.pop %v644
          %v646 = vmul.f32 %v640, 1.442695
          %v647 = vpow.pop %v646
          %v648 = vmul.f32 %v641, 1.442695
          %v649 = vpow.pop %v648
          %v650 = vld [vmem:[#allocation3] sm:$0xff]
          %v651 = vld [vmem:[#allocation3 + $0x8] sm:$0xff]
          %v652 = vld [vmem:[#allocation3 + $0x10] sm:$0xff]
          %v653 = vld [vmem:[#allocation3 + $0x18] sm:$0xff]
          %v654 = vmul.f32 %v643, %v650
          %v655 = vmul.f32 %v645, %v651
          %v656 = vmul.f32 %v647, %v652
          %v657 = vmul.f32 %v649, %v653
          %658 = vadd.xlane.f32.xlu0 %v634
          %v659 = vpop.xlane.xlu0 %658
          %660 = vadd.xlane.f32.xlu0 %v635
          %v661 = vpop.xlane.xlu0 %660
          %662 = vadd.xlane.f32.xlu0 %v636
          %v663 = vpop.xlane.xlu0 %662
          %664 = vadd.xlane.f32.xlu0 %v637
          %v665 = vpop.xlane.xlu0 %664
          %v666 = vadd.f32 %v654, %v659
          %v667 = vadd.f32 %v655, %v661
          %v668 = vadd.f32 %v656, %v663
          %v669 = vadd.f32 %v657, %v665
          %vm670 = vcmask 7168
          %671 = vst.msk [vmem:[#allocation3] sm:$0xff] %vm670, %v666
          %672 = vst.msk [vmem:[#allocation3 + $0x8] sm:$0xff] %vm670, %v667
          %673 = vst.msk [vmem:[#allocation3 + $0x10] sm:$0xff] %vm670, %v668
          %674 = vst.msk [vmem:[#allocation3 + $0x18] sm:$0xff] %vm670, %v669
          %675 = vmatprep.subr.mxu0 0.0
          %676 = vmatpush1.xpose.msra.mxu0 0.0
          %677 = vmatprep.subr.mxu0 0.0
          %678 = vmatpush1.xpose.msra.mxu0 0.0
          %679 = vmatprep.subr.mxu0 0.0
          %680 = vmatpush1.xpose.msra.mxu0 0.0
          %681 = vmatprep.subr.mxu0 0.0
          %682 = vmatpush1.xpose.msra.mxu0 0.0
          %683 = vmatprep.subr.mxu0 0.0
          %684 = vmatpush1.xpose.msra.mxu0 0.0
          %685 = vmatprep.subr.mxu0 0.0
          %686 = vmatpush1.xpose.msra.mxu0 0.0
          %687 = vmatprep.subr.mxu0 0.0
          %688 = vmatpush1.xpose.msra.mxu0 0.0
          %689 = vmatprep.subr.mxu0 0.0
          %690 = vmatpush1.xpose.msra.mxu0 0.0
          %691 = vmatprep.subr.mxu0 0.0
          %692 = vmatpush1.xpose.msra.mxu0 0.0
          %693 = vmatprep.subr.mxu0 0.0
          %694 = vmatpush1.xpose.msra.mxu0 0.0
          %695 = vmatprep.subr.mxu0 0.0
          %696 = vmatpush1.xpose.msra.mxu0 0.0
          %697 = vmatprep.subr.mxu0 0.0
          %698 = vmatpush1.xpose.msra.mxu0 0.0
          %699 = vmatprep.subr.mxu0 0.0
          %700 = vmatpush1.xpose.msra.mxu0 %v576
          %701 = vmatprep.subr.mxu0 0.0
          %702 = vmatpush1.xpose.msra.mxu0 %v571
          %703 = vmatprep.subr.mxu0 0.0
          %704 = vmatpush1.xpose.msra.mxu0 %v566
          %705 = vmatprep.subr.mxu0 0.0
          %706 = vmatpush1.xpose.msra.mxu0 %v561
          %707 = vmatprep.subr.mxu0 0.0
          %708 = vmatpush2.xpose.msra.mxu0 0.0
          %709 = vmatprep.subr.mxu0 0.0
          %710 = vmatpush2.xpose.msra.mxu0 0.0
          %711 = vmatprep.subr.mxu0 0.0
          %712 = vmatpush2.xpose.msra.mxu0 0.0
          %713 = vmatprep.subr.mxu0 0.0
          %714 = vmatpush2.xpose.msra.mxu0 0.0
          %715 = vmatprep.subr.mxu0 0.0
          %716 = vmatpush2.xpose.msra.mxu0 0.0
          %717 = vmatprep.subr.mxu0 0.0
          %718 = vmatpush2.xpose.msra.mxu0 0.0
          %719 = vmatprep.subr.mxu0 0.0
          %720 = vmatpush2.xpose.msra.mxu0 0.0
          %721 = vmatprep.subr.mxu0 0.0
          %722 = vmatpush2.xpose.msra.mxu0 0.0
          %723 = vmatprep.subr.mxu0 0.0
          %724 = vmatpush2.xpose.msra.mxu0 0.0
          %725 = vmatprep.subr.mxu0 0.0
          %726 = vmatpush2.xpose.msra.mxu0 0.0
          %727 = vmatprep.subr.mxu0 0.0
          %728 = vmatpush2.xpose.msra.mxu0 0.0
          %729 = vmatprep.subr.mxu0 0.0
          %730 = vmatpush2.xpose.msra.mxu0 0.0
          %731 = vmatprep.subr.mxu0 0.0
          %732 = vmatpush2.xpose.msra.mxu0 0.0
          %733 = vmatprep.subr.mxu0 0.0
          %734 = vmatpush2.xpose.msra.mxu0 0.0
          %735 = vmatprep.subr.mxu0 0.0
          %736 = vmatpush2.xpose.msra.mxu0 0.0
          %737 = vmatprep.subr.mxu0 0.0
          %738 = vmatpush2.xpose.msra.mxu0 0.0
          %739 = vmatprep.mubr.f32.mxu0 0.0
          %740 = vmatmul.mubr.f32.gmra.mxu0 %v634
          %v741 = vpop.f32.mrf.mxu0
          %v742 = vadd.f32 0.0, %v741
          %v743 = vpop.f32.mrf.mxu0
          %744 = vmatprep.mubr.f32.mxu0 0.0
          %745 = vmatmul.mubr.f32.gmra.mxu0 %v635
          %v746 = vpop.f32.mrf.mxu0
          %v747 = vadd.f32 0.0, %v746
          %v748 = vpop.f32.mrf.mxu0
          %749 = vmatprep.mubr.f32.mxu0 0.0
          %750 = vmatmul.mubr.f32.gmra.mxu0 %v636
          %v751 = vpop.f32.mrf.mxu0
          %v752 = vadd.f32 0.0, %v751
          %v753 = vpop.f32.mrf.mxu0
          %754 = vmatprep.mubr.f32.mxu0 0.0
          %755 = vmatmul.mubr.f32.gmra.mxu0 %v637
          %v756 = vpop.f32.mrf.mxu0
          %v757 = vadd.f32 0.0, %v756
          %v758 = vpop.f32.mrf.mxu0
          %759 = vdwg.mxu0
          %v760 = vld [vmem:[#allocation4] sm:$0xff]
          %v761 = vld [vmem:[#allocation4 + $0x8] sm:$0xff]
          %v762 = vld [vmem:[#allocation4 + $0x10] sm:$0xff]
          %v763 = vld [vmem:[#allocation4 + $0x18] sm:$0xff]
          %765 = vset.pattern.permute.xlu0 0
          %766 = vperm.xlu0 %765, %v643
          %v767 = vpop.permute.xlu0 %766
          %770 = vset.pattern.permute.xlu0 0
          %771 = vperm.xlu0 %770, %v645
          %v772 = vpop.permute.xlu0 %771
          %775 = vset.pattern.permute.xlu0 0
          %776 = vperm.xlu0 %775, %v647
          %v777 = vpop.permute.xlu0 %776
          %780 = vset.pattern.permute.xlu0 0
          %781 = vperm.xlu0 %780, %v649
          %v782 = vpop.permute.xlu0 %781
          %v784 = vmul.f32 %v767, %v760
          %v785 = vmul.f32 %v772, %v761
          %v786 = vmul.f32 %v777, %v762
          %v787 = vmul.f32 %v782, %v763
          %v788 = vadd.f32 %v784, %v742
          %v789 = vadd.f32 %v785, %v747
          %v790 = vadd.f32 %v786, %v752
          %v791 = vadd.f32 %v787, %v757
          %vm792 = vcmask 261120
          %793 = vst.msk [vmem:[#allocation4] sm:$0xff] %vm792, %v788
          %794 = vst.msk [vmem:[#allocation4 + $0x8] sm:$0xff] %vm792, %v789
          %795 = vst.msk [vmem:[#allocation4 + $0x10] sm:$0xff] %vm792, %v790
          %796 = vst.msk [vmem:[#allocation4 + $0x18] sm:$0xff] %vm792, %v791
          %797 = vst.msk [vmem:[#allocation2] sm:$0xff] %vm670, %v591
          %798 = vst.msk [vmem:[#allocation2 + $0x8] sm:$0xff] %vm670, %v592
          %799 = vst.msk [vmem:[#allocation2 + $0x10] sm:$0xff] %vm670, %v593
          %800 = vst.msk [vmem:[#allocation2 + $0x18] sm:$0xff] %vm670, %v594
        $region56: #{tpu_custom_call.1} parent=51 // pred_fallthru
          _
        %p801 = scmp.eq.s32.totalorder %s28, 1
        // Predicated region
        $region61: #{tpu_custom_call.1} parent=51 // pred_check
          %p802 = pneg %p801
        $region62: #{tpu_custom_call.1} parent=51 // pred_check_branch
          %804 = sbr.rel (%p802) target = $region64
        $region63: #{tpu_custom_call.1} parent=51 // pred_region
          %p805 = scmp.eq.s32.totalorder %s29, 0
          // Predicated region
          $region65: #{tpu_custom_call.1} parent=63 // pred_check
            %p806 = pneg %p805
          $region66: #{tpu_custom_call.1} parent=63 // pred_check_branch
            %808 = sbr.rel (%p806) target = $region68
          $region67: #{tpu_custom_call.1} parent=63 // pred_region
            %v809 = vld [vmem:[#allocation4] sm:$0xff]
            %v810 = vld [vmem:[#allocation4 + $0x8] sm:$0xff]
            %v811 = vld [vmem:[#allocation4 + $0x10] sm:$0xff]
            %v812 = vld [vmem:[#allocation4 + $0x18] sm:$0xff]
            %v813 = vld [vmem:[#allocation3] sm:$0xff]
            %v814 = vld [vmem:[#allocation3 + $0x8] sm:$0xff]
            %v815 = vld [vmem:[#allocation3 + $0x10] sm:$0xff]
            %v816 = vld [vmem:[#allocation3 + $0x18] sm:$0xff]
            %v817 = vrcp.pop %v813
            %v818 = vmul.f32 1.0, %v817
            %v819 = vrcp.pop %v814
            %v820 = vmul.f32 1.0, %v819
            %v821 = vrcp.pop %v815
            %v822 = vmul.f32 1.0, %v821
            %v823 = vrcp.pop %v816
            %v824 = vmul.f32 1.0, %v823
            %826 = vset.pattern.permute.xlu0 0
            %827 = vperm.xlu0 %826, %v818
            %v828 = vpop.permute.xlu0 %827
            %831 = vset.pattern.permute.xlu0 0
            %832 = vperm.xlu0 %831, %v820
            %v833 = vpop.permute.xlu0 %832
            %836 = vset.pattern.permute.xlu0 0
            %837 = vperm.xlu0 %836, %v822
            %v838 = vpop.permute.xlu0 %837
            %841 = vset.pattern.permute.xlu0 0
            %842 = vperm.xlu0 %841, %v824
            %v843 = vpop.permute.xlu0 %842
            %v845 = vmul.f32 %v809, %v828
            %v846 = vmul.f32 %v810, %v833
            %v847 = vmul.f32 %v811, %v838
            %v848 = vmul.f32 %v812, %v843
            %v849 = vld [vmem:[%s6] sm:$0xff]
            %v850 = vld [vmem:[%s6 + $0x8] sm:$0xff]
            %v851 = vld [vmem:[%s6 + $0x10] sm:$0xff]
            %v852 = vld [vmem:[%s6 + $0x18] sm:$0xff]
            %v853 = vmul.f32 %v845, %v849
            %v854 = vmul.f32 %v846, %v850
            %v855 = vmul.f32 %v847, %v851
            %v856 = vmul.f32 %v848, %v852
            %v857 = vld [vmem:[%s4] sm:$0xff]
            %vm858 = vcmask 261120
            %v860 = vsel %vm858, %v857, 0
            %v863 = vsel %vm858, %v853, 0
            %v866 = vsel %vm858, %v854, 0
            %v869 = vsel %vm858, %v855, 0
            %v872 = vsel %vm858, %v856, 0
            %874 = vmatprep.subr.mxu0 0.0
            %875 = vmatpush1.xpose.msra.mxu0 0.0
            %876 = vmatprep.subr.mxu0 0.0
            %877 = vmatpush1.xpose.msra.mxu0 0.0
            %878 = vmatprep.subr.mxu0 0.0
            %879 = vmatpush1.xpose.msra.mxu0 0.0
            %880 = vmatprep.subr.mxu0 0.0
            %881 = vmatpush1.xpose.msra.mxu0 0.0
            %882 = vmatprep.subr.mxu0 0.0
            %883 = vmatpush1.xpose.msra.mxu0 0.0
            %884 = vmatprep.subr.mxu0 0.0
            %885 = vmatpush1.xpose.msra.mxu0 0.0
            %886 = vmatprep.subr.mxu0 0.0
            %887 = vmatpush1.xpose.msra.mxu0 0.0
            %888 = vmatprep.subr.mxu0 0.0
            %889 = vmatpush1.xpose.msra.mxu0 0.0
            %890 = vmatprep.subr.mxu0 0.0
            %891 = vmatpush1.xpose.msra.mxu0 0.0
            %892 = vmatprep.subr.mxu0 0.0
            %893 = vmatpush1.xpose.msra.mxu0 0.0
            %894 = vmatprep.subr.mxu0 0.0
            %895 = vmatpush1.xpose.msra.mxu0 0.0
            %896 = vmatprep.subr.mxu0 0.0
            %897 = vmatpush1.xpose.msra.mxu0 0.0
            %898 = vmatprep.subr.mxu0 0.0
            %899 = vmatpush1.xpose.msra.mxu0 %v872
            %900 = vmatprep.subr.mxu0 0.0
            %901 = vmatpush1.xpose.msra.mxu0 %v869
            %902 = vmatprep.subr.mxu0 0.0
            %903 = vmatpush1.xpose.msra.mxu0 %v866
            %904 = vmatprep.subr.mxu0 0.0
            %905 = vmatpush1.xpose.msra.mxu0 %v863
            %906 = vmatprep.subr.mxu0 0.0
            %907 = vmatpush2.xpose.msra.mxu0 0.0
            %908 = vmatprep.subr.mxu0 0.0
            %909 = vmatpush2.xpose.msra.mxu0 0.0
            %910 = vmatprep.subr.mxu0 0.0
            %911 = vmatpush2.xpose.msra.mxu0 0.0
            %912 = vmatprep.subr.mxu0 0.0
            %913 = vmatpush2.xpose.msra.mxu0 0.0
            %914 = vmatprep.subr.mxu0 0.0
            %915 = vmatpush2.xpose.msra.mxu0 0.0
            %916 = vmatprep.subr.mxu0 0.0
            %917 = vmatpush2.xpose.msra.mxu0 0.0
            %918 = vmatprep.subr.mxu0 0.0
            %919 = vmatpush2.xpose.msra.mxu0 0.0
            %920 = vmatprep.subr.mxu0 0.0
            %921 = vmatpush2.xpose.msra.mxu0 0.0
            %922 = vmatprep.subr.mxu0 0.0
            %923 = vmatpush2.xpose.msra.mxu0 0.0
            %924 = vmatprep.subr.mxu0 0.0
            %925 = vmatpush2.xpose.msra.mxu0 0.0
            %926 = vmatprep.subr.mxu0 0.0
            %927 = vmatpush2.xpose.msra.mxu0 0.0
            %928 = vmatprep.subr.mxu0 0.0
            %929 = vmatpush2.xpose.msra.mxu0 0.0
            %930 = vmatprep.subr.mxu0 0.0
            %931 = vmatpush2.xpose.msra.mxu0 0.0
            %932 = vmatprep.subr.mxu0 0.0
            %933 = vmatpush2.xpose.msra.mxu0 0.0
            %934 = vmatprep.subr.mxu0 0.0
            %935 = vmatpush2.xpose.msra.mxu0 0.0
            %936 = vmatprep.subr.mxu0 0.0
            %937 = vmatpush2.xpose.msra.mxu0 0.0
            %938 = vmatprep.mubr.f32.mxu0 0.0
            %939 = vmatmul.mubr.f32.gmra.mxu0 %v860
            %v940 = vpop.f32.mrf.mxu0
            %v941 = vadd.f32 0.0, %v940
            %v942 = vpop.f32.mrf.mxu0
            %943 = vdwg.mxu0
            %v944 = vld [vmem:[%s1] sm:$0xff]
            %v945 = vld [vmem:[%s1 + $0x8] sm:$0xff]
            %v946 = vld [vmem:[%s1 + $0x10] sm:$0xff]
            %v947 = vld [vmem:[%s1 + $0x18] sm:$0xff]
            %v949 = vsel %vm858, %v941, 0
            %951 = vmatprep.subr.mxu0 0.0
            %952 = vmatpush1.msra.mxu0 0.0
            %953 = vmatprep.subr.mxu0 0.0
            %954 = vmatpush1.msra.mxu0 0.0
            %955 = vmatprep.subr.mxu0 0.0
            %956 = vmatpush1.msra.mxu0 0.0
            %957 = vmatprep.subr.mxu0 0.0
            %958 = vmatpush1.msra.mxu0 0.0
            %959 = vmatprep.subr.mxu0 0.0
            %960 = vmatpush1.msra.mxu0 0.0
            %961 = vmatprep.subr.mxu0 0.0
            %962 = vmatpush1.msra.mxu0 0.0
            %963 = vmatprep.subr.mxu0 0.0
            %964 = vmatpush1.msra.mxu0 0.0
            %965 = vmatprep.subr.mxu0 0.0
            %966 = vmatpush1.msra.mxu0 0.0
            %967 = vmatprep.subr.mxu0 0.0
            %968 = vmatpush1.msra.mxu0 0.0
            %969 = vmatprep.subr.mxu0 0.0
            %970 = vmatpush1.msra.mxu0 0.0
            %971 = vmatprep.subr.mxu0 0.0
            %972 = vmatpush1.msra.mxu0 0.0
            %973 = vmatprep.subr.mxu0 0.0
            %974 = vmatpush1.msra.mxu0 0.0
            %975 = vmatprep.subr.mxu0 0.0
            %976 = vmatpush1.msra.mxu0 %v947
            %977 = vmatprep.subr.mxu0 0.0
            %978 = vmatpush1.msra.mxu0 %v946
            %979 = vmatprep.subr.mxu0 0.0
            %980 = vmatpush1.msra.mxu0 %v945
            %981 = vmatprep.subr.mxu0 0.0
            %982 = vmatpush1.msra.mxu0 %v944
            %983 = vmatprep.subr.mxu0 0.0
            %984 = vmatpush2.msra.mxu0 0.0
            %985 = vmatprep.subr.mxu0 0.0
            %986 = vmatpush2.msra.mxu0 0.0
            %987 = vmatprep.subr.mxu0 0.0
            %988 = vmatpush2.msra.mxu0 0.0
            %989 = vmatprep.subr.mxu0 0.0
            %990 = vmatpush2.msra.mxu0 0.0
            %991 = vmatprep.subr.mxu0 0.0
            %992 = vmatpush2.msra.mxu0 0.0
            %993 = vmatprep.subr.mxu0 0.0
            %994 = vmatpush2.msra.mxu0 0.0
            %995 = vmatprep.subr.mxu0 0.0
            %996 = vmatpush2.msra.mxu0 0.0
            %997 = vmatprep.subr.mxu0 0.0
            %998 = vmatpush2.msra.mxu0 0.0
            %999 = vmatprep.subr.mxu0 0.0
            %1000 = vmatpush2.msra.mxu0 0.0
            %1001 = vmatprep.subr.mxu0 0.0
            %1002 = vmatpush2.msra.mxu0 0.0
            %1003 = vmatprep.subr.mxu0 0.0
            %1004 = vmatpush2.msra.mxu0 0.0
            %1005 = vmatprep.subr.mxu0 0.0
            %1006 = vmatpush2.msra.mxu0 0.0
            %1007 = vmatprep.subr.mxu0 0.0
            %1008 = vmatpush2.msra.mxu0 0.0
            %1009 = vmatprep.subr.mxu0 0.0
            %1010 = vmatpush2.msra.mxu0 0.0
            %1011 = vmatprep.subr.mxu0 0.0
            %1012 = vmatpush2.msra.mxu0 0.0
            %1013 = vmatprep.subr.mxu0 0.0
            %1014 = vmatpush2.msra.mxu0 0.0
            %1015 = vmatprep.mubr.f32.mxu0 0.0
            %1016 = vmatmul.mubr.f32.gmra.mxu0 %v949
            %v1017 = vpop.f32.mrf.mxu0
            %v1018 = vadd.f32 0.0, %v1017
            %v1019 = vpop.f32.mrf.mxu0
            %1020 = vdwg.mxu0
            %vm1021 = vcmask 64512
            %1022 = vst.msk [vmem:[#allocation5] sm:$0xff] %vm1021, %v1018
          $region68: #{tpu_custom_call.1} parent=63 // pred_fallthru
            _
          %v1023 = vld [vmem:[#allocation5] sm:$0xff]
          %v1024 = vld [vmem:[%s348] sm:$0xff]
          %v1025 = vld [vmem:[%s5] sm:$0xff]
          %1027 = vset.pattern.permute.xlu0 0
          %1028 = vperm.xlu0 %1027, %v1025
          %v1029 = vpop.permute.xlu0 %1028
          %vm1031 = vcmask 64512
          %v1033 = vsel %vm1031, %v1023, 0
          %1035 = vmatprep.subr.mxu0 0.0
          %1036 = vmatpush1.msra.mxu0 0.0
          %1037 = vmatprep.subr.mxu0 0.0
          %1038 = vmatpush1.msra.mxu0 0.0
          %1039 = vmatprep.subr.mxu0 0.0
          %1040 = vmatpush1.msra.mxu0 0.0
          %1041 = vmatprep.subr.mxu0 0.0
          %1042 = vmatpush1.msra.mxu0 0.0
          %1043 = vmatprep.subr.mxu0 0.0
          %1044 = vmatpush1.msra.mxu0 0.0
          %1045 = vmatprep.subr.mxu0 0.0
          %1046 = vmatpush1.msra.mxu0 0.0
          %1047 = vmatprep.subr.mxu0 0.0
          %1048 = vmatpush1.msra.mxu0 0.0
          %1049 = vmatprep.subr.mxu0 0.0
          %1050 = vmatpush1.msra.mxu0 0.0
          %1051 = vmatprep.subr.mxu0 0.0
          %1052 = vmatpush1.msra.mxu0 0.0
          %1053 = vmatprep.subr.mxu0 0.0
          %1054 = vmatpush1.msra.mxu0 0.0
          %1055 = vmatprep.subr.mxu0 0.0
          %1056 = vmatpush1.msra.mxu0 0.0
          %1057 = vmatprep.subr.mxu0 0.0
          %1058 = vmatpush1.msra.mxu0 0.0
          %1059 = vmatprep.subr.mxu0 0.0
          %1060 = vmatpush1.msra.mxu0 0.0
          %1061 = vmatprep.subr.mxu0 0.0
          %1062 = vmatpush1.msra.mxu0 0.0
          %1063 = vmatprep.subr.mxu0 0.0
          %1064 = vmatpush1.msra.mxu0 0.0
          %1065 = vmatprep.subr.mxu0 0.0
          %1066 = vmatpush1.msra.mxu0 %v1024
          %1067 = vmatprep.subr.mxu0 0.0
          %1068 = vmatpush2.msra.mxu0 0.0
          %1069 = vmatprep.subr.mxu0 0.0
          %1070 = vmatpush2.msra.mxu0 0.0
          %1071 = vmatprep.subr.mxu0 0.0
          %1072 = vmatpush2.msra.mxu0 0.0
          %1073 = vmatprep.subr.mxu0 0.0
          %1074 = vmatpush2.msra.mxu0 0.0
          %1075 = vmatprep.subr.mxu0 0.0
          %1076 = vmatpush2.msra.mxu0 0.0
          %1077 = vmatprep.subr.mxu0 0.0
          %1078 = vmatpush2.msra.mxu0 0.0
          %1079 = vmatprep.subr.mxu0 0.0
          %1080 = vmatpush2.msra.mxu0 0.0
          %1081 = vmatprep.subr.mxu0 0.0
          %1082 = vmatpush2.msra.mxu0 0.0
          %1083 = vmatprep.subr.mxu0 0.0
          %1084 = vmatpush2.msra.mxu0 0.0
          %1085 = vmatprep.subr.mxu0 0.0
          %1086 = vmatpush2.msra.mxu0 0.0
          %1087 = vmatprep.subr.mxu0 0.0
          %1088 = vmatpush2.msra.mxu0 0.0
          %1089 = vmatprep.subr.mxu0 0.0
          %1090 = vmatpush2.msra.mxu0 0.0
          %1091 = vmatprep.subr.mxu0 0.0
          %1092 = vmatpush2.msra.mxu0 0.0
          %1093 = vmatprep.subr.mxu0 0.0
          %1094 = vmatpush2.msra.mxu0 0.0
          %1095 = vmatprep.subr.mxu0 0.0
          %1096 = vmatpush2.msra.mxu0 0.0
          %1097 = vmatprep.subr.mxu0 0.0
          %1098 = vmatpush2.msra.mxu0 0.0
          %1099 = vmatprep.mubr.f32.mxu0 0.0
          %1100 = vmatmul.mubr.f32.gmra.mxu0 %v1033
          %v1101 = vpop.f32.mrf.mxu0
          %v1102 = vadd.f32 %v1029, %v1101
          %v1103 = vpop.f32.mrf.mxu0
          %1104 = vdwg.mxu0
          %1105 = vst [vmem:[%s340] sm:$0xff] %v1102
        $region64: #{tpu_custom_call.1} parent=51 // pred_fallthru
          _
        %s1106 = sand.u32 %s233, 1
        %s1107 = scalar_lea.sflag [#allocation7], %s1106
        %s1108 = sand.u32 %s233, 1
        %s1109 = smul.addr %s1108, 8
        %s1110 = scalar_lea.vmem [#allocation6], %s1109
        // Predicated region
        $region69: #{tpu_custom_call.1} parent=51 // pred_check
          %p1111 = pneg %p243
        $region70: #{tpu_custom_call.1} parent=51 // pred_check_branch
          %1113 = sbr.rel (%p1111) target = $region72
        $region71: #{tpu_custom_call.1} parent=51 // pred_region
          %s1114 = smul.u32 %s29, %s28
          %s1116 = ssub.s32 128, 128
          %1117 = vsyncadd %s1107, %s1116
          %s1118 = smul.addr %s27, 2
          %s1119 = sadd.s32 %s1114, %s1118
          %s1120 = smul.addr %s1119, 128
          %s1121 = scalar_lea.hbm %s8, %s1120
          %s1123 = sshll.u32 %s1110, 4
          %s1124 = int_to_ptr.vmem [resolvable:$true] %s1123
          %1126 = dma.vmem_to_hbm [thread:$0]  %s1124, 128, %s1121, %s1107
        $region72: #{tpu_custom_call.1} parent=51 // pred_fallthru
          _
      $region52: #{tpu_custom_call.1} parent=5 // pred_fallthru
        _
      %p1127 = scmp.le.s32.totalorder 2, %s17
      // Predicated region
      $region73: #{tpu_custom_call.1} parent=5 // pred_check
        %p1128 = pneg %p1127
      $region74: #{tpu_custom_call.1} parent=5 // pred_check_branch
        %1130 = sbr.rel (%p1128) target = $region76
      $region75: #{tpu_custom_call.1} parent=5 // pred_region
        %s1131 = ssub.s32 %s17, 2
        // Predicated region
        $region77: #{tpu_custom_call.1} parent=75 // pred_check
          %p1132 = pneg %p249
        $region78: #{tpu_custom_call.1} parent=75 // pred_check_branch
          %1134 = sbr.rel (%p1132) target = $region80
        $region79: #{tpu_custom_call.1} parent=75 // pred_region
          %s1135 = sand.u32 %s234, 1
          %s1136 = scalar_lea.sflag [#allocation7], %s1135
          %s1137 = sand.u32 %s234, 1
          %s1138 = smul.addr %s1137, 8
          %s1139 = scalar_lea.vmem [#allocation6], %s1138
          %1140 = dma.done %s1136, 128
        $region80: #{tpu_custom_call.1} parent=75 // pred_fallthru
          _
      $region76: #{tpu_custom_call.1} parent=5 // pred_fallthru
        _
    $region6: #{tpu_custom_call.1} parent=1 // loop_footer
      %s21 = sadd.s32 1, %s17
    $region7: #{tpu_custom_call.1} parent=1 // loop_footer_branch
      %16 = sbr.rel target = $region3
    $region8: #{tpu_custom_call.1} parent=1 // loop_exit
      _
    %1141 = vsyncpa [#allocation7], 1
    %s1142 = scalar_lea.sflag [#allocation7], 1
    %1143 = vsyncpa %s1142, 1

</llo_original>
